<compile_context>
chip_gen: v7x
topology: tpu7x:2x2x1
jax: 0.10.0
libtpu: 0.0.40
codegen_flags: <defaults>
</compile_context>

<pallas_src>
import functools

import jax
import jax.numpy as jnp
from jax.experimental import pallas as pl
from jax.experimental.pallas import tpu as pltpu


def _round_up(a, b):
    return -(-a // b) * b


def _vmem_capacity_bytes(default=64 * 1024 * 1024):
    """Trace-time VMEM capacity query with a conservative fallback (v7x)."""
    try:
        cap = getattr(pltpu.get_tpu_info(), "vmem_capacity_bytes", None)
        if cap:
            return int(cap)
    except Exception:
        pass
    return default


def _soft_dice_kernel(x_ref, t_ref, out_ref, *, block_rows, valid_rows, needs_mask):
    """Grid = (batch, feature_chunk).

    out_ref is a (3, 8, 128) f32 accumulator resident across the innermost
    reduction axis j: row 0 = intersection partials, row 1 = sum(probs),
    row 2 = sum(targets), each folded down to an (8,128) vreg per batch.
    """
    j = pl.program_id(1)

    @pl.when(j == 0)
    def _():
        out_ref[...] = jnp.zeros_like(out_ref)

    x = x_ref[...].astype(jnp.float32)
    t = t_ref[...].astype(jnp.float32)
    # Single EUP push per element: sigmoid(x) == 0.5 * (tanh(x / 2) + 1).
    probs = 0.5 * jnp.tanh(0.5 * x) + 0.5

    def accumulate(p, tt):
        p3 = p.reshape(block_rows // 8, 8, 128)    # free, tile-aligned reshape
        t3 = tt.reshape(block_rows // 8, 8, 128)
        out_ref[0] += jnp.sum(p3 * t3, axis=0)     # intersection (vreg adds)
        out_ref[1] += jnp.sum(p3, axis=0)          # sum(probs)
        out_ref[2] += jnp.sum(t3, axis=0)          # sum(targets)

    if needs_mask:
        # Only the last chunk can contain out-of-bounds (garbage) tail rows;
        # gate the iota/compare/select work to that single grid step.
        last = pl.num_programs(1) - 1

        @pl.when(j != last)
        def _():
            accumulate(probs, t)

        @pl.when(j == last)
        def _():
            row = jax.lax.broadcasted_iota(jnp.int32, (block_rows, 128), 0)
            valid = (j * block_rows + row) < valid_rows
            accumulate(jnp.where(valid, probs, 0.0), jnp.where(valid, t, 0.0))
    else:
        accumulate(probs, t)


@functools.partial(jax.jit, static_argnames=("block_bytes",))
def soft_dice_loss(logits, targets, block_bytes=2 * 1024 * 1024):
    """Pallas SoftDiceLoss forward. logits/targets: (B, ...) -> scalar f32."""
    bs = logits.shape[0]
    m1 = logits.reshape(bs, -1)
    m2 = targets.reshape(bs, -1)
    n = m1.shape[1]

    # Only the reshape to (bs, n/128, 128) needs 128-alignment.  Pad values are
    # chosen so padded elements contribute exactly zero to all three sums
    # (sigmoid(very negative) == 0, target == 0), so no column mask is needed.
    # The common segmentation case (N % 128 == 0) takes the copy-free path.
    pad = (-n) % 128
    if pad:
        if jnp.issubdtype(m1.dtype, jnp.floating):
            neg = float(jnp.finfo(m1.dtype).min)
        else:
            neg = -(2 ** 30)
        m1 = jnp.pad(m1, ((0, 0), (0, pad)), constant_values=neg)
        m2 = jnp.pad(m2, ((0, 0), (0, pad)), constant_values=0)
    n128 = (n + pad) // 128
    m1 = m1.reshape(bs, n128, 128)               # sublane/lane-dense layout
    m2 = m2.reshape(bs, n128, 128)

    is1, is2 = m1.dtype.itemsize, m2.dtype.itemsize
    itemsize_sum = is1 + is2
    # Sublane-packing row alignment (f32: 8, bf16: 16, int8/bool: 32); always a
    # multiple of 8 so the in-kernel (r/8, 8, 128) fold is a free reshape.
    row_align = max(8, 32 // max(1, min(is1, is2)))

    # Rows per block from the byte budget...
    r = max(row_align,
            (block_bytes // (128 * max(is1, is2))) // row_align * row_align)
    # ...but keep >= MIN_CHUNKS pipeline steps per batch row on large inputs so
    # the first/last DMA overlap compute (1-4 MiB blocks already hit ~85% BW).
    MIN_CHUNKS = 4
    if n128 >= MIN_CHUNKS * row_align:
        r = min(r, _round_up(-(-n128 // MIN_CHUNKS), row_align))
    r = min(r, _round_up(n128, row_align))

    # VMEM-capacity-aware clamp (2 inputs x 2 pipeline buffers per block) so a
    # single code path is safe on v7x's 64 MiB as well as v5e/v6e's 128 MiB.
    budget = min(48 << 20, max(16 << 20, _vmem_capacity_bytes() // 2))
    while r > row_align and 2 * r * 128 * itemsize_sum + (4 << 20) > budget:
        r = max(row_align, (r // 2) // row_align * row_align)

    num_chunks = -(-n128 // r)
    needs_mask = (num_chunks * r != n128)

    kernel = functools.partial(_soft_dice_kernel, block_rows=r,
                               valid_rows=n128, needs_mask=needs_mask)

    in_spec = pl.BlockSpec((None, r, 128), lambda b, j: (b, j, 0))
    out_spec = pl.BlockSpec((None, 3, 8, 128), lambda b, j: (b, 0, 0, 0))
    out_shape = jax.ShapeDtypeStruct((bs, 3, 8, 128), jnp.float32)

    # Explicit scoped-VMEM limit (load-bearing on v5e's 16 MiB default).
    vmem_limit = int(max(32 << 20, 2 * r * 128 * itemsize_sum + (8 << 20)))

    cost = pl.CostEstimate(
        flops=int(5 * m1.size),
        transcendentals=int(m1.size),
        bytes_accessed=int(m1.size * is1 + m2.size * is2 + bs * 3 * 8 * 128 * 4))

    # TODO(synk): when bs == 1 (or odd) on v7x, additionally split the chunk
    # axis across the two TensorCores (extra parallel axis + per-core
    # accumulator slots summed in the wrapper) so one core does not idle.
    parts = pl.pallas_call(
        kernel,
        out_shape=out_shape,
        grid_spec=pltpu.PrefetchScalarGridSpec(
            num_scalar_prefetch=0,
            grid=(bs, num_chunks),               # reduction axis innermost
            in_specs=[in_spec, in_spec],
            out_specs=out_spec,
        ),
        compiler_params=pltpu.CompilerParams(
            dimension_semantics=("parallel", "arbitrary"),
            vmem_limit_bytes=vmem_limit),
        cost_estimate=cost,
    )(m1, m2)

    # Tiny epilogue in plain XLA: lane/sublane reduction + dice arithmetic.
    inter = jnp.sum(parts[:, 0], axis=(1, 2))    # (B,)
    sp = jnp.sum(parts[:, 1], axis=(1, 2))
    st = jnp.sum(parts[:, 2], axis=(1, 2))
    smooth = jnp.float32(1.0)
    score = 2.0 * (inter + smooth) / (sp + st + smooth)
    return jnp.float32(1.0) - jnp.sum(score) / jnp.float32(bs)


def _soft_dice_loss_ref(logits, targets):
    """Pure-JAX reference mirroring the PyTorch forward."""
    bs = logits.shape[0]
    probs = jax.nn.sigmoid(logits.astype(jnp.float32)).reshape(bs, -1)
    m2 = targets.astype(jnp.float32).reshape(bs, -1)
    inter = jnp.sum(probs * m2, axis=1)
    score = 2.0 * (inter + 1.0) / (jnp.sum(probs, axis=1) + jnp.sum(m2, axis=1) + 1.0)
    return 1.0 - jnp.sum(score) / bs


if __name__ == "__main__":
    key = jax.random.PRNGKey(0)
    k1, k2 = jax.random.split(key)

    # Primary case: N = C*H*W = 1024 (multiple of 128 -> no pad, no mask).
    B, C, H, W = 2, 4, 16, 16
    logits = jax.random.normal(k1, (B, C, H, W), dtype=jnp.float32)
    targets = (jax.random.uniform(k2, (B, C, H, W)) > 0.5).astype(jnp.float32)

    loss = soft_dice_loss(logits, targets)
    jax.block_until_ready(loss)
    ref = _soft_dice_loss_ref(logits, targets)
    assert jnp.allclose(loss, ref, rtol=2e-5, atol=2e-5), (loss, ref)

    # Ragged case exercising the zero-contribution pad + gated tail-row mask
    # (N = 189 -> pad to 256, 2 valid rows in an 8-row block).
    k3, k4 = jax.random.split(k2)
    logits2 = jax.random.normal(k3, (2, 3, 7, 9), dtype=jnp.float32)
    targets2 = (jax.random.uniform(k4, (2, 3, 7, 9)) > 0.5).astype(jnp.float32)
    loss2 = soft_dice_loss(logits2, targets2)
    jax.block_until_ready(loss2)
    ref2 = _soft_dice_loss_ref(logits2, targets2)
    assert jnp.allclose(loss2, ref2, rtol=2e-5, atol=2e-5), (loss2, ref2)

    # bf16 inputs, multi-chunk reduction path (N = 8192 -> 4 pipeline steps).
    k5, k6 = jax.random.split(k4)
    logits3 = jax.random.normal(k5, (2, 8, 32, 32), dtype=jnp.bfloat16)
    targets3 = (jax.random.uniform(k6, (2, 8, 32, 32)) > 0.5).astype(jnp.bfloat16)
    loss3 = soft_dice_loss(logits3, targets3)
    jax.block_until_ready(loss3)
    ref3 = _soft_dice_loss_ref(logits3, targets3)
    assert jnp.allclose(loss3, ref3, rtol=1e-4, atol=1e-4), (loss3, ref3)

    print("KERNEL_OK")
</pallas_src>

<mosaic_0001>
module attributes {stable_mosaic.version = 11 : i64} {
  func.func @_soft_dice_kernel(%arg0: i32, %arg1: i32, %arg2: memref<1x8x128xf32, #tpu.memory_space<vmem>>, %arg3: memref<1x8x128xf32, #tpu.memory_space<vmem>>, %arg4: memref<1x3x8x128xf32, #tpu.memory_space<vmem>>) attributes {dimension_semantics = [#tpu.dimension_semantics<parallel>, #tpu.dimension_semantics<arbitrary>], iteration_bounds = array<i64: 2, 1>, scalar_prefetch = 0 : i64, scratch_operands = 0 : i64, tpu.core_type = #tpu.core_type<tc>, window_params = [{transform_indices = @transform_0, window_bounds = array<i64: 1, 8, 128>}, {transform_indices = @transform_1, window_bounds = array<i64: 1, 8, 128>}, {transform_indices = @transform_2, window_bounds = array<i64: 1, 3, 8, 128>}]} {
    %c0_i32 = arith.constant 0 : i32
    %0 = arith.cmpi eq, %arg1, %c0_i32 : i32
    %1 = arith.extui %0 : i1 to i32
    %c0_i32_0 = arith.constant 0 : i32
    %2 = arith.cmpi ne, %1, %c0_i32_0 : i32
    scf.if %2 {
      %cst_33 = arith.constant 0.000000e+00 : f32
      %38 = vector.broadcast %cst_33 : f32 to vector<3x8x128xf32>
      %c0_34 = arith.constant 0 : index
      %c0_35 = arith.constant 0 : index
      %c0_36 = arith.constant 0 : index
      %c0_37 = arith.constant 0 : index
      %39 = vector.load %arg4[%c0_34, %c0_35, %c0_36, %c0_37] : memref<1x3x8x128xf32, #tpu.memory_space<vmem>>, vector<1x3x8x128xf32>
      %40 = vector.shape_cast %39 : vector<1x3x8x128xf32> to vector<3x8x128xf32>
      %41 = vector.shape_cast %38 : vector<3x8x128xf32> to vector<1x3x8x128xf32>
      tpu.vector_store %arg4[%c0_34, %c0_35, %c0_36, %c0_37], %41 {strides = array<i32>} : memref<1x3x8x128xf32, #tpu.memory_space<vmem>>, vector<1x3x8x128xf32>,
    } else {
    }
    %c0 = arith.constant 0 : index
    %c0_1 = arith.constant 0 : index
    %c0_2 = arith.constant 0 : index
    %3 = vector.load %arg2[%c0, %c0_1, %c0_2] : memref<1x8x128xf32, #tpu.memory_space<vmem>>, vector<1x8x128xf32>
    %4 = vector.shape_cast %3 : vector<1x8x128xf32> to vector<8x128xf32>
    %c0_3 = arith.constant 0 : index
    %c0_4 = arith.constant 0 : index
    %c0_5 = arith.constant 0 : index
    %5 = vector.load %arg3[%c0_3, %c0_4, %c0_5] : memref<1x8x128xf32, #tpu.memory_space<vmem>>, vector<1x8x128xf32>
    %6 = vector.shape_cast %5 : vector<1x8x128xf32> to vector<8x128xf32>
    %cst = arith.constant 5.000000e-01 : f32
    %7 = vector.broadcast %cst : f32 to vector<8x128xf32>
    %8 = arith.mulf %7, %4 : vector<8x128xf32>
    %9 = math.tanh %8 : vector<8x128xf32>
    %cst_6 = arith.constant 5.000000e-01 : f32
    %10 = vector.broadcast %cst_6 : f32 to vector<8x128xf32>
    %11 = arith.mulf %10, %9 : vector<8x128xf32>
    %cst_7 = arith.constant 5.000000e-01 : f32
    %12 = vector.broadcast %cst_7 : f32 to vector<8x128xf32>
    %13 = arith.addf %11, %12 : vector<8x128xf32>
    %14 = vector.shape_cast %13 : vector<8x128xf32> to vector<1x8x128xf32>
    %15 = vector.shape_cast %6 : vector<8x128xf32> to vector<1x8x128xf32>
    %c0_8 = arith.constant 0 : index
    %c0_9 = arith.constant 0 : index
    %c0_10 = arith.constant 0 : index
    %c0_11 = arith.constant 0 : index
    %16 = vector.load %arg4[%c0_8, %c0_9, %c0_10, %c0_11] : memref<1x3x8x128xf32, #tpu.memory_space<vmem>>, vector<1x1x8x128xf32>
    %17 = vector.shape_cast %16 : vector<1x1x8x128xf32> to vector<8x128xf32>
    %18 = arith.mulf %14, %15 : vector<1x8x128xf32>
    %cst_12 = arith.constant dense<0.000000e+00> : vector<8x128xf32>
    %19 = vector.multi_reduction <add>, %18, %cst_12 [0] : vector<1x8x128xf32> to vector<8x128xf32>
    %20 = arith.addf %17, %19 : vector<8x128xf32>
    %c0_13 = arith.constant 0 : index
    %c0_14 = arith.constant 0 : index
    %c0_15 = arith.constant 0 : index
    %c0_16 = arith.constant 0 : index
    %21 = vector.load %arg4[%c0_13, %c0_14, %c0_15, %c0_16] : memref<1x3x8x128xf32, #tpu.memory_space<vmem>>, vector<1x1x8x128xf32>
    %22 = vector.shape_cast %21 : vector<1x1x8x128xf32> to vector<8x128xf32>
    %23 = vector.shape_cast %20 : vector<8x128xf32> to vector<1x1x8x128xf32>
    tpu.vector_store %arg4[%c0_13, %c0_14, %c0_15, %c0_16], %23 {strides = array<i32>} : memref<1x3x8x128xf32, #tpu.memory_space<vmem>>, vector<1x1x8x128xf32>,
    %c0_17 = arith.constant 0 : index
    %c1 = arith.constant 1 : index
    %c0_18 = arith.constant 0 : index
    %c0_19 = arith.constant 0 : index
    %24 = vector.load %arg4[%c0_17, %c1, %c0_18, %c0_19] : memref<1x3x8x128xf32, #tpu.memory_space<vmem>>, vector<1x1x8x128xf32>
    %25 = vector.shape_cast %24 : vector<1x1x8x128xf32> to vector<8x128xf32>
    %cst_20 = arith.constant dense<0.000000e+00> : vector<8x128xf32>
    %26 = vector.multi_reduction <add>, %14, %cst_20 [0] : vector<1x8x128xf32> to vector<8x128xf32>
    %27 = arith.addf %25, %26 : vector<8x128xf32>
    %c0_21 = arith.constant 0 : index
    %c1_22 = arith.constant 1 : index
    %c0_23 = arith.constant 0 : index
    %c0_24 = arith.constant 0 : index
    %28 = vector.load %arg4[%c0_21, %c1_22, %c0_23, %c0_24] : memref<1x3x8x128xf32, #tpu.memory_space<vmem>>, vector<1x1x8x128xf32>
    %29 = vector.shape_cast %28 : vector<1x1x8x128xf32> to vector<8x128xf32>
    %30 = vector.shape_cast %27 : vector<8x128xf32> to vector<1x1x8x128xf32>
    tpu.vector_store %arg4[%c0_21, %c1_22, %c0_23, %c0_24], %30 {strides = array<i32>} : memref<1x3x8x128xf32, #tpu.memory_space<vmem>>, vector<1x1x8x128xf32>,
    %c0_25 = arith.constant 0 : index
    %c2 = arith.constant 2 : index
    %c0_26 = arith.constant 0 : index
    %c0_27 = arith.constant 0 : index
    %31 = vector.load %arg4[%c0_25, %c2, %c0_26, %c0_27] : memref<1x3x8x128xf32, #tpu.memory_space<vmem>>, vector<1x1x8x128xf32>
    %32 = vector.shape_cast %31 : vector<1x1x8x128xf32> to vector<8x128xf32>
    %cst_28 = arith.constant dense<0.000000e+00> : vector<8x128xf32>
    %33 = vector.multi_reduction <add>, %15, %cst_28 [0] : vector<1x8x128xf32> to vector<8x128xf32>
    %34 = arith.addf %32, %33 : vector<8x128xf32>
    %c0_29 = arith.constant 0 : index
    %c2_30 = arith.constant 2 : index
    %c0_31 = arith.constant 0 : index
    %c0_32 = arith.constant 0 : index
    %35 = vector.load %arg4[%c0_29, %c2_30, %c0_31, %c0_32] : memref<1x3x8x128xf32, #tpu.memory_space<vmem>>, vector<1x1x8x128xf32>
    %36 = vector.shape_cast %35 : vector<1x1x8x128xf32> to vector<8x128xf32>
    %37 = vector.shape_cast %34 : vector<8x128xf32> to vector<1x1x8x128xf32>
    tpu.vector_store %arg4[%c0_29, %c2_30, %c0_31, %c0_32], %37 {strides = array<i32>} : memref<1x3x8x128xf32, #tpu.memory_space<vmem>>, vector<1x1x8x128xf32>,
    return
  }
  func.func @transform_0(%arg0: i32, %arg1: i32) -> (i32, i32, i32) {
    %c0_i32 = arith.constant 0 : i32
    %c0_i32_0 = arith.constant 0 : i32
    return %arg0, %arg1, %c0_i32 : i32, i32, i32
  }
  func.func @transform_1(%arg0: i32, %arg1: i32) -> (i32, i32, i32) {
    %c0_i32 = arith.constant 0 : i32
    %c0_i32_0 = arith.constant 0 : i32
    return %arg0, %arg1, %c0_i32 : i32, i32, i32
  }
  func.func @transform_2(%arg0: i32, %arg1: i32) -> (i32, i32, i32, i32) {
    %c0_i32 = arith.constant 0 : i32
    %c0_i32_0 = arith.constant 0 : i32
    %c0_i32_1 = arith.constant 0 : i32
    %c0_i32_2 = arith.constant 0 : i32
    return %arg0, %c0_i32, %c0_i32_0, %c0_i32_1 : i32, i32, i32, i32
  }
}

</mosaic_0001>

<llo_original>
// kernel: soft_dice_loss.1
$region0: #{soft_dice_loss.1}
  #allocation0 [shape = 'u32[]', space=smem, size = 0x4, offset = 0x4, fixed_abs, tag = 'smem constant byte address 0x4 - core index']
  #allocation1 [shape = 'u32[144,128]{1,0:T(1,128)}', space=vmem, size = 0x12000, scoped, tag = 'internal scratch']
  %s0 = inlined_call_operand.vmem [shape: f32[2,8,128], index: 0, kind: input, shape index: {}]
  %s1 = inlined_call_operand.vmem [shape: f32[2,8,128], index: 1, kind: input, shape index: {}]
  %s2 = inlined_call_operand.vmem [shape: f32[2,3,8,128], index: 2, kind: output, shape index: {}]
  %s3 = sld [smem:[#allocation0]]
  $region45: #{soft_dice_loss.1} parent=0
    _
  %s5 = ssub.s32 1, %s3
  %s6 = scalar_select 0, %s5, %s3
  loop: start=0, step=1, limit=4
  $region2: #{soft_dice_loss.1} parent=0 // loop_pre_header
    _
  $region3: #{soft_dice_loss.1} parent=0 // loop_header
    %s8 = sphi 0, %s12
    %p9 = scmp.ge.s32.totalorder %s8, 4
    %s15 = sphi 0, %s27
    %s16 = sphi 0, %s23
    %s17 = sphi 0, %s15
    %s18 = sphi 0, %s16
    %s19 = sphi 0, %s17
    %s20 = sphi 0, %s18
    %s32 = sphi 0, %s34
    %s35 = sphi 0, %s32
    %s36 = sphi 0, %s35
    %s52 = sphi 0, %s36
    %s60 = sphi 0, %s62
    %s63 = sphi 0, %s60
    %s64 = sphi 0, %s63
    %s80 = sphi 0, %s64
    %s86 = sphi 0, %s88
    %s89 = sphi 0, %s86
    %s90 = sphi 0, %s89
    %s106 = sphi 0, %s90
  $region4: #{soft_dice_loss.1} parent=0 // loop_header_branch
    %11 = sbr.rel (%p9) target = $region8
  $region5: #{soft_dice_loss.1} parent=0 // loop_body
    %s13 = ssub.s32 %s8, 1
    %s14 = ssub.s32 %s8, 2
    %s21 = sadd.s32 1, %s16
    %p22 = scmp.ge.s32.totalorder %s21, 1
    %s23 = scalar_select %p22, 0, %s21
    %s24 = sadd.s32 1, %s15
    %s25 = scalar_select %p22, %s24, %s15
    %p26 = scmp.ge.s32.totalorder %s25, 2
    %s27 = scalar_select %p26, 0, %s25
    %s28 = ssub.s32 %s15, %s27
    %s29 = ssub.s32 %s16, %s23
    %s30 = sor.u32 %s28, %s29
    %p31 = scmp.eq.s32.totalorder %s30, 0
    %s33 = sadd.s32 %s32, 1
    %s34 = scalar_select %p31, %s32, %s33
    %p37 = pneg %p31
    %p38 = scmp.eq.s32.totalorder %s8, 1
    %p39 = por %p37, %p38
    %p40 = scmp.ne.s32.totalorder %s32, %s35
    %p41 = scmp.eq.s32.totalorder %s8, 0
    %p42 = por %p40, %p41
    %p43 = scmp.ne.s32.totalorder %s32, %s35
    %p44 = scmp.eq.s32.totalorder %s13, 1
    %p45 = por %p43, %p44
    %p46 = scmp.ne.s32.totalorder %s35, %s36
    %p47 = scmp.eq.s32.totalorder %s13, 0
    %p48 = por %p46, %p47
    %p49 = scmp.ne.s32.totalorder %s35, %s36
    %p50 = scmp.eq.s32.totalorder %s14, 1
    %p51 = por %p49, %p50
    %p53 = scmp.ne.s32.totalorder %s36, %s52
    %p54 = scmp.eq.s32.totalorder %s14, 0
    %p55 = por %p53, %p54
    %s56 = ssub.s32 %s15, %s27
    %s57 = ssub.s32 %s16, %s23
    %s58 = sor.u32 %s56, %s57
    %p59 = scmp.eq.s32.totalorder %s58, 0
    %s61 = sadd.s32 %s60, 1
    %s62 = scalar_select %p59, %s60, %s61
    %p65 = pneg %p59
    %p66 = scmp.eq.s32.totalorder %s8, 1
    %p67 = por %p65, %p66
    %p68 = scmp.ne.s32.totalorder %s60, %s63
    %p69 = scmp.eq.s32.totalorder %s8, 0
    %p70 = por %p68, %p69
    %p71 = scmp.ne.s32.totalorder %s60, %s63
    %p72 = scmp.eq.s32.totalorder %s13, 1
    %p73 = por %p71, %p72
    %p74 = scmp.ne.s32.totalorder %s63, %s64
    %p75 = scmp.eq.s32.totalorder %s13, 0
    %p76 = por %p74, %p75
    %p77 = scmp.ne.s32.totalorder %s63, %s64
    %p78 = scmp.eq.s32.totalorder %s14, 1
    %p79 = por %p77, %p78
    %p81 = scmp.ne.s32.totalorder %s64, %s80
    %p82 = scmp.eq.s32.totalorder %s14, 0
    %p83 = por %p81, %p82
    %s84 = ssub.s32 %s15, %s27
    %p85 = scmp.eq.s32.totalorder %s84, 0
    %s87 = sadd.s32 %s86, 1
    %s88 = scalar_select %p85, %s86, %s87
    %p91 = pneg %p85
    %p92 = scmp.eq.s32.totalorder %s8, 1
    %p93 = por %p91, %p92
    %p94 = scmp.ne.s32.totalorder %s86, %s89
    %p95 = scmp.eq.s32.totalorder %s8, 0
    %p96 = por %p94, %p95
    %p97 = scmp.ne.s32.totalorder %s86, %s89
    %p98 = scmp.eq.s32.totalorder %s13, 1
    %p99 = por %p97, %p98
    %p100 = scmp.ne.s32.totalorder %s89, %s90
    %p101 = scmp.eq.s32.totalorder %s13, 0
    %p102 = por %p100, %p101
    %p103 = scmp.ne.s32.totalorder %s89, %s90
    %p104 = scmp.eq.s32.totalorder %s14, 1
    %p105 = por %p103, %p104
    %p107 = scmp.ne.s32.totalorder %s90, %s106
    %p108 = scmp.eq.s32.totalorder %s14, 0
    %p109 = por %p107, %p108
    %p110 = scmp.le.s32.totalorder 1, %s8
    %p111 = scmp.lt.s32.totalorder %s8, 3
    %p112 = pnand %p110, %p111
    %p113 = pneg %p112
    // Predicated region
    $region9: #{soft_dice_loss.1} parent=5 // pred_check
      _
    $region10: #{soft_dice_loss.1} parent=5 // pred_check_branch
      %115 = sbr.rel (%p112) target = $region12
    $region11: #{soft_dice_loss.1} parent=5 // pred_region
      %s116 = ssub.s32 %s8, 1
    $region12: #{soft_dice_loss.1} parent=5 // pred_fallthru
      _
    %p117 = scmp.lt.s32.totalorder %s8, 2
    // Predicated region
    $region13: #{soft_dice_loss.1} parent=5 // pred_check
      %p118 = pneg %p117
    $region14: #{soft_dice_loss.1} parent=5 // pred_check_branch
      %120 = sbr.rel (%p118) target = $region16
    $region15: #{soft_dice_loss.1} parent=5 // pred_region
      // Predicated region
      $region17: #{soft_dice_loss.1} parent=15 // pred_check
        %p121 = pneg %p42
      $region18: #{soft_dice_loss.1} parent=15 // pred_check_branch
        %123 = sbr.rel (%p121) target = $region20
      $region19: #{soft_dice_loss.1} parent=15 // pred_region
        %p124 = scmp.lt.s32.totalorder %s15, 1
        %s125 = scalar_select %p124, %s15, 1
        %p126 = scmp.lt.s32.totalorder %s16, 0
        %s127 = scalar_select %p126, %s16, 0
        %s128 = sadd.s32 %s127, %s125
        %s129 = smul.addr %s128, 8
        %s130 = scalar_lea.vmem %s0, %s129
      $region20: #{soft_dice_loss.1} parent=15 // pred_fallthru
        _
      // Predicated region
      $region21: #{soft_dice_loss.1} parent=15 // pred_check
        %p131 = pneg %p70
      $region22: #{soft_dice_loss.1} parent=15 // pred_check_branch
        %133 = sbr.rel (%p131) target = $region24
      $region23: #{soft_dice_loss.1} parent=15 // pred_region
        %p134 = scmp.lt.s32.totalorder %s15, 1
        %s135 = scalar_select %p134, %s15, 1
        %p136 = scmp.lt.s32.totalorder %s16, 0
        %s137 = scalar_select %p136, %s16, 0
        %s138 = sadd.s32 %s137, %s135
        %s139 = smul.addr %s138, 8
        %s140 = scalar_lea.vmem %s1, %s139
      $region24: #{soft_dice_loss.1} parent=15 // pred_fallthru
        _
    $region16: #{soft_dice_loss.1} parent=5 // pred_fallthru
      _
    %p141 = scmp.le.s32.totalorder 1, %s8
    %p142 = scmp.lt.s32.totalorder %s8, 3
    %p143 = pnand %p141, %p142
    %p144 = pneg %p143
    // Predicated region
    $region25: #{soft_dice_loss.1} parent=5 // pred_check
      _
    $region26: #{soft_dice_loss.1} parent=5 // pred_check_branch
      %146 = sbr.rel (%p143) target = $region28
    $region27: #{soft_dice_loss.1} parent=5 // pred_region
      %s147 = ssub.s32 %s8, 1
      %p148 = scmp.lt.s32.totalorder %s17, 1
      %s149 = scalar_select %p148, %s17, 1
      %p150 = scmp.lt.s32.totalorder %s18, 0
      %s151 = scalar_select %p150, %s18, 0
      %s152 = sadd.s32 %s151, %s149
      %s153 = smul.addr %s152, 8
      %s154 = scalar_lea.vmem %s0, %s153
      %p155 = pneg %p48
      %p156 = pneg %p45
      %p157 = scmp.lt.s32.totalorder %s17, 1
      %s158 = scalar_select %p157, %s17, 1
      %p159 = scmp.lt.s32.totalorder %s18, 0
      %s160 = scalar_select %p159, %s18, 0
      %s161 = sadd.s32 %s160, %s158
      %s162 = smul.addr %s161, 8
      %s163 = scalar_lea.vmem %s1, %s162
      %p164 = pneg %p76
      %p165 = pneg %p73
      %p166 = pneg %p102
      %p167 = pneg %p99
      %p168 = scmp.lt.s32.totalorder %s17, 1
      %s169 = scalar_select %p168, %s17, 1
      %s170 = smul.addr %s169, 3
      %s171 = smul.addr %s170, 8
      %s172 = scalar_lea.vmem %s2, %s171
      %p173 = scmp.lt.s32.totalorder %s17, 1
      %s174 = scalar_select %p173, %s17, 1
      %p175 = scmp.lt.s32.totalorder %s18, 0
      %s176 = scalar_select %p175, %s18, 0
      %s177 = sadd.s32 %s176, %s174
      %s178 = smul.addr %s177, 8
      %s179 = scalar_lea.vmem %s0, %s178
      %p180 = scmp.lt.s32.totalorder %s17, 1
      %s181 = scalar_select %p180, %s17, 1
      %p182 = scmp.lt.s32.totalorder %s18, 0
      %s183 = scalar_select %p182, %s18, 0
      %s184 = sadd.s32 %s183, %s181
      %s185 = smul.addr %s184, 8
      %s186 = scalar_lea.vmem %s1, %s185
      %p187 = scmp.lt.s32.totalorder %s17, 1
      %s188 = scalar_select %p187, %s17, 1
      %s189 = smul.addr %s188, 3
      %s190 = smul.addr %s189, 8
      %s191 = scalar_lea.vmem %s2, %s190
      %p192 = scmp.eq.s32.totalorder %s18, 0
      // Predicated region
      $region29: #{soft_dice_loss.1} parent=27 // pred_check
        %p193 = pneg %p192
      $region30: #{soft_dice_loss.1} parent=27 // pred_check_branch
        %195 = sbr.rel (%p193) target = $region32
      $region31: #{soft_dice_loss.1} parent=27 // pred_region
        %196 = vst [vmem:[%s191] sm:$0xff] 0.0
        %197 = vst [vmem:[%s191 + $0x8] sm:$0xff] 0.0
        %198 = vst [vmem:[%s191 + $0x10] sm:$0xff] 0.0
      $region32: #{soft_dice_loss.1} parent=27 // pred_fallthru
        _
      %v199 = vld [vmem:[%s179] sm:$0xff]
      %v200 = vld [vmem:[%s186] sm:$0xff]
      %v201 = vmul.f32 %v199, 0.5
      %v202 = vtanh.pop %v201
      %v203 = vmul.f32 %v202, 0.5
      %v204 = vadd.f32 %v203, 0.5
      %v205 = vld [vmem:[%s191] sm:$0xff]
      %v206 = vmul.f32 %v204, %v200
      %v207 = vadd.f32 %v206, 0.0
      %v208 = vadd.f32 %v205, %v207
      %209 = vst [vmem:[%s191] sm:$0xff] %v208
      %s210 = scalar_lea.vmem %s191, 8
      %v211 = vld [vmem:[%s210] sm:$0xff]
      %v212 = vadd.f32 %v204, 0.0
      %v213 = vadd.f32 %v211, %v212
      %214 = vst [vmem:[%s210] sm:$0xff] %v213
      %s215 = scalar_lea.vmem %s191, 16
      %v216 = vld [vmem:[%s215] sm:$0xff]
      %v217 = vadd.f32 %v200, 0.0
      %v218 = vadd.f32 %v216, %v217
      %219 = vst [vmem:[%s215] sm:$0xff] %v218
      %p220 = scmp.lt.s32.totalorder %s17, 1
      %s221 = scalar_select %p220, %s17, 1
      %s222 = smul.addr %s221, 3
      %s223 = smul.addr %s222, 8
      %s224 = scalar_lea.vmem %s2, %s223
      // Predicated region
      $region33: #{soft_dice_loss.1} parent=27 // pred_check
        %p225 = pneg %p99
      $region34: #{soft_dice_loss.1} parent=27 // pred_check_branch
        %227 = sbr.rel (%p225) target = $region36
      $region35: #{soft_dice_loss.1} parent=27 // pred_region
        _
      $region36: #{soft_dice_loss.1} parent=27 // pred_fallthru
        _
    $region28: #{soft_dice_loss.1} parent=5 // pred_fallthru
      _
    %p228 = scmp.le.s32.totalorder 2, %s8
    // Predicated region
    $region37: #{soft_dice_loss.1} parent=5 // pred_check
      %p229 = pneg %p228
    $region38: #{soft_dice_loss.1} parent=5 // pred_check_branch
      %231 = sbr.rel (%p229) target = $region40
    $region39: #{soft_dice_loss.1} parent=5 // pred_region
      %s232 = ssub.s32 %s8, 2
      // Predicated region
      $region41: #{soft_dice_loss.1} parent=39 // pred_check
        %p233 = pneg %p105
      $region42: #{soft_dice_loss.1} parent=39 // pred_check_branch
        %235 = sbr.rel (%p233) target = $region44
      $region43: #{soft_dice_loss.1} parent=39 // pred_region
        %p236 = scmp.lt.s32.totalorder %s19, 1
        %s237 = scalar_select %p236, %s19, 1
        %s238 = smul.addr %s237, 3
        %s239 = smul.addr %s238, 8
        %s240 = scalar_lea.vmem %s2, %s239
      $region44: #{soft_dice_loss.1} parent=39 // pred_fallthru
        _
    $region40: #{soft_dice_loss.1} parent=5 // pred_fallthru
      _
  $region6: #{soft_dice_loss.1} parent=0 // loop_footer
    %s12 = sadd.s32 1, %s8
  $region7: #{soft_dice_loss.1} parent=0 // loop_footer_branch
    %7 = sbr.rel target = $region3
  $region8: #{soft_dice_loss.1} parent=0 // loop_exit
    _

</llo_original>
